<compile_context>
chip_gen: v6e
topology: v6e:2x2x1
jax: 0.10.0
libtpu: 0.0.40
codegen_flags: <defaults>
</compile_context>

<pallas_src>
import functools

import jax
import jax.numpy as jnp
from jax.experimental import pallas as pl
from jax.experimental.pallas import tpu as pltpu


def _round_up(x, n):
    return ((x + n - 1) // n) * n


def _pick_tile_m(m_rows_aligned, c_pad, elem_bytes):
    """Largest row tile (multiple of 8, <=1024) keeping double-buffered
    in+out blocks within ~8 MiB of VMEM on every TPU generation."""
    budget = 8 * 1024 * 1024
    tm = budget // (4 * c_pad * max(elem_bytes, 4))
    tm = max(8, min(1024, (tm // 8) * 8))
    return min(tm, m_rows_aligned)


def _bn_stats_kernel(x_ref, sum_ref, sumsq_ref):
    # Per-channel sum and sum-of-squares, accumulated in f32 across M tiles.
    @pl.when(pl.program_id(0) == 0)
    def _():
        sum_ref[...] = jnp.zeros_like(sum_ref)
        sumsq_ref[...] = jnp.zeros_like(sumsq_ref)

    x = x_ref[...].astype(jnp.float32)
    sum_ref[...] += jnp.sum(x, axis=0, keepdims=True)
    sumsq_ref[...] += jnp.sum(x * x, axis=0, keepdims=True)


def _bn_apply_kernel(x_ref, scale_ref, shift_ref, o_ref):
    # y = x * scale + shift  (scale/shift are (1, C) and broadcast over rows).
    x = x_ref[...].astype(jnp.float32)
    o_ref[...] = (x * scale_ref[...] + shift_ref[...]).astype(o_ref.dtype)


@functools.partial(jax.jit, static_argnames=("eps",))
def batch_norm_sequence(x, gamma, beta, eps=1e-5):
    """Training-mode BatchNorm over the feature (last) axis of a (B, T, C)
    batch-first sequence. Matches BatchNormSequence.forward."""
    b, t, c = x.shape
    m = b * t
    x2d = x.reshape(m, c)

    elem_bytes = jnp.dtype(x.dtype).itemsize
    c_pad = _round_up(c, 128)                      # lane-dense last dim
    tm = _pick_tile_m(_round_up(m, 8), c_pad, elem_bytes)
    m_pad = _round_up(m, tm)
    n_tiles = m_pad // tm

    if (m_pad, c_pad) != (m, c):
        # Zero padding is harmless for the sums (divide by the true m below)
        # and padded rows/channels are sliced off at the end.
        x2d = jnp.pad(x2d, ((0, m_pad - m), (0, c_pad - c)))

    # ---- Pass 1: per-channel batch statistics --------------------------------
    sums, sumsqs = pl.pallas_call(
        _bn_stats_kernel,
        out_shape=(
            jax.ShapeDtypeStruct((1, c_pad), jnp.float32),
            jax.ShapeDtypeStruct((1, c_pad), jnp.float32),
        ),
        grid_spec=pltpu.PrefetchScalarGridSpec(
            num_scalar_prefetch=0,
            grid=(n_tiles,),
            in_specs=[pl.BlockSpec((tm, c_pad), lambda i: (i, 0))],
            out_specs=(
                pl.BlockSpec((1, c_pad), lambda i: (0, 0)),
                pl.BlockSpec((1, c_pad), lambda i: (0, 0)),
            ),
        ),
        compiler_params=pltpu.CompilerParams(
            dimension_semantics=("arbitrary",),
        ),
        cost_estimate=pl.CostEstimate(
            flops=3 * m_pad * c_pad,
            transcendentals=0,
            bytes_accessed=m_pad * c_pad * elem_bytes + 2 * c_pad * 4,
        ),
    )(x2d)

    # Tiny (1, C) math stays in plain JAX: biased variance, as BatchNorm uses
    # for normalization; fold gamma/beta into a single scale/shift pair.
    mean = sums / m
    var = jnp.maximum(sumsqs / m - mean * mean, 0.0)
    inv = jax.lax.rsqrt(var + eps)

    gamma_pad = jnp.zeros((1, c_pad), jnp.float32).at[0, :c].set(
        gamma.astype(jnp.float32))
    beta_pad = jnp.zeros((1, c_pad), jnp.float32).at[0, :c].set(
        beta.astype(jnp.float32))

    scale = gamma_pad * inv
    shift = beta_pad - mean * scale

    # ---- Pass 2: normalize ----------------------------------------------------
    y2d = pl.pallas_call(
        _bn_apply_kernel,
        out_shape=jax.ShapeDtypeStruct((m_pad, c_pad), x.dtype),
        grid_spec=pltpu.PrefetchScalarGridSpec(
            num_scalar_prefetch=0,
            grid=(n_tiles,),
            in_specs=[
                pl.BlockSpec((tm, c_pad), lambda i: (i, 0)),
                pl.BlockSpec((1, c_pad), lambda i: (0, 0)),
                pl.BlockSpec((1, c_pad), lambda i: (0, 0)),
            ],
            out_specs=pl.BlockSpec((tm, c_pad), lambda i: (i, 0)),
        ),
        compiler_params=pltpu.CompilerParams(
            dimension_semantics=("parallel",),
        ),
        cost_estimate=pl.CostEstimate(
            flops=2 * m_pad * c_pad,
            transcendentals=0,
            bytes_accessed=2 * m_pad * c_pad * elem_bytes + 2 * c_pad * 4,
        ),
    )(x2d, scale, shift)

    return y2d[:m, :c].reshape(b, t, c)


def init_batch_norm_params(channels, dtype=jnp.float32):
    """Matches nn.BatchNorm1d defaults: weight=1, bias=0."""
    return jnp.ones((channels,), dtype), jnp.zeros((channels,), dtype)


if __name__ == "__main__":
    key = jax.random.PRNGKey(0)
    k_x, k_g, k_b = jax.random.split(key, 3)

    batch, seq, channels = 2, 8, 32
    x = jax.random.normal(k_x, (batch, seq, channels), dtype=jnp.float32)
    # Non-default affine params to exercise the gamma/beta path.
    gamma = 1.0 + 0.1 * jax.random.normal(k_g, (channels,), dtype=jnp.float32)
    beta = 0.1 * jax.random.normal(k_b, (channels,), dtype=jnp.float32)

    y = batch_norm_sequence(x, gamma, beta)
    y = jax.block_until_ready(y)

    # Reference: training-mode BatchNorm1d math (per-channel stats over B*T,
    # biased variance) on the un-permuted (B, T, C) layout.
    x2d = x.reshape(-1, channels)
    mean_ref = x2d.mean(axis=0)
    var_ref = x2d.var(axis=0)  # ddof=0, as BatchNorm uses for normalization
    y_ref = (x - mean_ref) * jax.lax.rsqrt(var_ref + 1e-5) * gamma + beta

    assert y.shape == x.shape
    assert jnp.allclose(y, y_ref, atol=1e-4, rtol=1e-4)
    print("KERNEL_OK")
</pallas_src>

<mosaic_0001>
module attributes {stable_mosaic.version = 11 : i64} {
  func.func @_bn_stats_kernel(%arg0: i32, %arg1: memref<16x128xf32, #tpu.memory_space<vmem>>, %arg2: memref<1x128xf32, #tpu.memory_space<vmem>>, %arg3: memref<1x128xf32, #tpu.memory_space<vmem>>) attributes {dimension_semantics = [#tpu.dimension_semantics<arbitrary>], iteration_bounds = array<i64: 1>, scalar_prefetch = 0 : i64, scratch_operands = 0 : i64, tpu.core_type = #tpu.core_type<tc>, window_params = [{transform_indices = @transform_0, window_bounds = array<i64: 16, 128>}, {pipeline_mode = #tpu.pipeline_mode<synchronous>, transform_indices = @transform_1, window_bounds = array<i64: 1, 128>}, {pipeline_mode = #tpu.pipeline_mode<synchronous>, transform_indices = @transform_2, window_bounds = array<i64: 1, 128>}]} {
    %c0_i32 = arith.constant 0 : i32
    %0 = arith.cmpi eq, %arg0, %c0_i32 : i32
    %1 = arith.extui %0 : i1 to i32
    %c0_i32_0 = arith.constant 0 : i32
    %2 = arith.cmpi ne, %1, %c0_i32_0 : i32
    scf.if %2 {
      %cst_11 = arith.constant 0.000000e+00 : f32
      %15 = vector.broadcast %cst_11 : f32 to vector<1x128xf32>
      %c0_12 = arith.constant 0 : index
      %c0_13 = arith.constant 0 : index
      %16 = vector.load %arg2[%c0_12, %c0_13] : memref<1x128xf32, #tpu.memory_space<vmem>>, vector<1x128xf32>
      tpu.vector_store %arg2[%c0_12, %c0_13], %15 {strides = array<i32>} : memref<1x128xf32, #tpu.memory_space<vmem>>, vector<1x128xf32>,
      %cst_14 = arith.constant 0.000000e+00 : f32
      %17 = vector.broadcast %cst_14 : f32 to vector<1x128xf32>
      %c0_15 = arith.constant 0 : index
      %c0_16 = arith.constant 0 : index
      %18 = vector.load %arg3[%c0_15, %c0_16] : memref<1x128xf32, #tpu.memory_space<vmem>>, vector<1x128xf32>
      tpu.vector_store %arg3[%c0_15, %c0_16], %17 {strides = array<i32>} : memref<1x128xf32, #tpu.memory_space<vmem>>, vector<1x128xf32>,
    } else {
    }
    %c0 = arith.constant 0 : index
    %c0_1 = arith.constant 0 : index
    %3 = vector.load %arg1[%c0, %c0_1] : memref<16x128xf32, #tpu.memory_space<vmem>>, vector<16x128xf32>
    %c0_2 = arith.constant 0 : index
    %c0_3 = arith.constant 0 : index
    %4 = vector.load %arg2[%c0_2, %c0_3] : memref<1x128xf32, #tpu.memory_space<vmem>>, vector<1x128xf32>
    %cst = arith.constant dense<0.000000e+00> : vector<128xf32>
    %5 = vector.multi_reduction <add>, %3, %cst [0] : vector<16x128xf32> to vector<128xf32>
    %6 = vector.shape_cast %5 : vector<128xf32> to vector<1x128xf32>
    %7 = arith.addf %4, %6 : vector<1x128xf32>
    %c0_4 = arith.constant 0 : index
    %c0_5 = arith.constant 0 : index
    %8 = vector.load %arg2[%c0_4, %c0_5] : memref<1x128xf32, #tpu.memory_space<vmem>>, vector<1x128xf32>
    tpu.vector_store %arg2[%c0_4, %c0_5], %7 {strides = array<i32>} : memref<1x128xf32, #tpu.memory_space<vmem>>, vector<1x128xf32>,
    %c0_6 = arith.constant 0 : index
    %c0_7 = arith.constant 0 : index
    %9 = vector.load %arg3[%c0_6, %c0_7] : memref<1x128xf32, #tpu.memory_space<vmem>>, vector<1x128xf32>
    %10 = arith.mulf %3, %3 : vector<16x128xf32>
    %cst_8 = arith.constant dense<0.000000e+00> : vector<128xf32>
    %11 = vector.multi_reduction <add>, %10, %cst_8 [0] : vector<16x128xf32> to vector<128xf32>
    %12 = vector.shape_cast %11 : vector<128xf32> to vector<1x128xf32>
    %13 = arith.addf %9, %12 : vector<1x128xf32>
    %c0_9 = arith.constant 0 : index
    %c0_10 = arith.constant 0 : index
    %14 = vector.load %arg3[%c0_9, %c0_10] : memref<1x128xf32, #tpu.memory_space<vmem>>, vector<1x128xf32>
    tpu.vector_store %arg3[%c0_9, %c0_10], %13 {strides = array<i32>} : memref<1x128xf32, #tpu.memory_space<vmem>>, vector<1x128xf32>,
    return
  }
  func.func @transform_0(%arg0: i32) -> (i32, i32) {
    %c0_i32 = arith.constant 0 : i32
    %c0_i32_0 = arith.constant 0 : i32
    return %arg0, %c0_i32 : i32, i32
  }
  func.func @transform_1(%arg0: i32) -> (i32, i32) {
    %c0_i32 = arith.constant 0 : i32
    %c0_i32_0 = arith.constant 0 : i32
    %c0_i32_1 = arith.constant 0 : i32
    return %c0_i32, %c0_i32_0 : i32, i32
  }
  func.func @transform_2(%arg0: i32) -> (i32, i32) {
    %c0_i32 = arith.constant 0 : i32
    %c0_i32_0 = arith.constant 0 : i32
    %c0_i32_1 = arith.constant 0 : i32
    return %c0_i32, %c0_i32_0 : i32, i32
  }
}

module attributes {stable_mosaic.version = 11 : i64} {
  func.func @_bn_apply_kernel(%arg0: i32, %arg1: memref<16x128xf32, #tpu.memory_space<vmem>>, %arg2: memref<1x128xf32, #tpu.memory_space<vmem>>, %arg3: memref<1x128xf32, #tpu.memory_space<vmem>>, %arg4: memref<16x128xf32, #tpu.memory_space<vmem>>) attributes {dimension_semantics = [#tpu.dimension_semantics<parallel>], iteration_bounds = array<i64: 1>, scalar_prefetch = 0 : i64, scratch_operands = 0 : i64, tpu.core_type = #tpu.core_type<tc>, window_params = [{transform_indices = @transform_0, window_bounds = array<i64: 16, 128>}, {pipeline_mode = #tpu.pipeline_mode<synchronous>, transform_indices = @transform_1, window_bounds = array<i64: 1, 128>}, {pipeline_mode = #tpu.pipeline_mode<synchronous>, transform_indices = @transform_2, window_bounds = array<i64: 1, 128>}, {transform_indices = @transform_3, window_bounds = array<i64: 16, 128>}]} {
    %c0 = arith.constant 0 : index
    %c0_0 = arith.constant 0 : index
    %0 = vector.load %arg1[%c0, %c0_0] : memref<16x128xf32, #tpu.memory_space<vmem>>, vector<16x128xf32>
    %c0_1 = arith.constant 0 : index
    %c0_2 = arith.constant 0 : index
    %1 = vector.load %arg2[%c0_1, %c0_2] : memref<1x128xf32, #tpu.memory_space<vmem>>, vector<1x128xf32>
    %2 = vector.broadcast %1 : vector<1x128xf32> to vector<16x128xf32>
    %3 = arith.mulf %0, %2 : vector<16x128xf32>
    %c0_3 = arith.constant 0 : index
    %c0_4 = arith.constant 0 : index
    %4 = vector.load %arg3[%c0_3, %c0_4] : memref<1x128xf32, #tpu.memory_space<vmem>>, vector<1x128xf32>
    %5 = vector.broadcast %4 : vector<1x128xf32> to vector<16x128xf32>
    %6 = arith.addf %3, %5 : vector<16x128xf32>
    %c0_5 = arith.constant 0 : index
    %c0_6 = arith.constant 0 : index
    %7 = vector.load %arg4[%c0_5, %c0_6] : memref<16x128xf32, #tpu.memory_space<vmem>>, vector<16x128xf32>
    tpu.vector_store %arg4[%c0_5, %c0_6], %6 {strides = array<i32>} : memref<16x128xf32, #tpu.memory_space<vmem>>, vector<16x128xf32>,
    return
  }
  func.func @transform_0(%arg0: i32) -> (i32, i32) {
    %c0_i32 = arith.constant 0 : i32
    %c0_i32_0 = arith.constant 0 : i32
    return %arg0, %c0_i32 : i32, i32
  }
  func.func @transform_1(%arg0: i32) -> (i32, i32) {
    %c0_i32 = arith.constant 0 : i32
    %c0_i32_0 = arith.constant 0 : i32
    %c0_i32_1 = arith.constant 0 : i32
    return %c0_i32, %c0_i32_0 : i32, i32
  }
  func.func @transform_2(%arg0: i32) -> (i32, i32) {
    %c0_i32 = arith.constant 0 : i32
    %c0_i32_0 = arith.constant 0 : i32
    %c0_i32_1 = arith.constant 0 : i32
    return %c0_i32, %c0_i32_0 : i32, i32
  }
  func.func @transform_3(%arg0: i32) -> (i32, i32) {
    %c0_i32 = arith.constant 0 : i32
    %c0_i32_0 = arith.constant 0 : i32
    return %arg0, %c0_i32 : i32, i32
  }
}

</mosaic_0001>

<llo_original>
// kernel: batch_norm_sequence.2
$region0: #{batch_norm_sequence.2}
  #allocation0 [shape = 'u32[]', space=smem, size = 0x4, offset = 0x4, fixed_abs, tag = 'smem constant byte address 0x4 - core index']
  #allocation1 [shape = 'u32[144,128]{1,0:T(1,128)}', space=vmem, size = 0x12000, scoped, tag = 'internal scratch']
  %s0 = inlined_call_operand.vmem [shape: f32[16,128], index: 0, kind: input, shape index: {}]
  %s1 = inlined_call_operand.vmem [shape: f32[1,128], index: 1, kind: output, shape index: {0}]
  %s2 = inlined_call_operand.vmem [shape: f32[1,128], index: 2, kind: output, shape index: {1}]
  %3 = xla_tuple %s1, %s2
  %s4 = sld [smem:[#allocation0]]
  $region26: #{batch_norm_sequence.2} parent=0
    _
  %s6 = ssub.s32 1, %s4
  %s7 = scalar_select 0, %s6, %s4
  // Predicated region
  $region2: #{batch_norm_sequence.2} parent=0 // pred_check
    _
  $region3: #{batch_norm_sequence.2} parent=0 // pred_check_branch
    %9 = sbr.rel (0) target = $region5
  $region4: #{batch_norm_sequence.2} parent=0 // pred_region
    _
  $region5: #{batch_norm_sequence.2} parent=0 // pred_fallthru
    _
  %p10 = scmp.eq.s32.totalorder 0, 0
  // Predicated region
  $region6: #{batch_norm_sequence.2} parent=0 // pred_check
    %p11 = pneg %p10
  $region7: #{batch_norm_sequence.2} parent=0 // pred_check_branch
    %13 = sbr.rel (%p11) target = $region9
  $region8: #{batch_norm_sequence.2} parent=0 // pred_region
    %14 = vst [vmem:[%s1] sm:$0x1] 0.0
    %15 = vst [vmem:[%s2] sm:$0x1] 0.0
  $region9: #{batch_norm_sequence.2} parent=0 // pred_fallthru
    _
  %v16 = vld [vmem:[%s0] sm:$0xff]
  %v17 = vld [vmem:[%s0 + $0x8] sm:$0xff]
  %v18 = vld [vmem:[%s1] sm:$0x1]
  %v19 = vadd.f32 %v16, %v17
  %v20 = vrot.slane %v19, 4
  %v21 = vadd.f32 %v19, %v20
  %v22 = vrot.slane %v21, 2
  %v23 = vadd.f32 %v21, %v22
  %v24 = vrot.slane %v23, 1
  %v25 = vadd.f32 %v23, %v24
  %v26 = vadd.f32 %v18, %v25
  %27 = vst [vmem:[%s1] sm:$0x1] %v26
  %v28 = vld [vmem:[%s2] sm:$0x1]
  %v29 = vmul.f32 %v16, %v16
  %v30 = vmul.f32 %v17, %v17
  %v31 = vadd.f32 %v29, %v30
  %v32 = vrot.slane %v31, 4
  %v33 = vadd.f32 %v31, %v32
  %v34 = vrot.slane %v33, 2
  %v35 = vadd.f32 %v33, %v34
  %v36 = vrot.slane %v35, 1
  %v37 = vadd.f32 %v35, %v36
  %v38 = vadd.f32 %v28, %v37
  %39 = vst [vmem:[%s2] sm:$0x1] %v38
  // Predicated region
  $region10: #{batch_norm_sequence.2} parent=0 // pred_check
    _
  $region11: #{batch_norm_sequence.2} parent=0 // pred_check_branch
    %41 = sbr.rel (0) target = $region13
  $region12: #{batch_norm_sequence.2} parent=0 // pred_region
    _
  $region13: #{batch_norm_sequence.2} parent=0 // pred_fallthru
    _
  // Predicated region
  $region14: #{batch_norm_sequence.2} parent=0 // pred_check
    _
  $region15: #{batch_norm_sequence.2} parent=0 // pred_check_branch
    %43 = sbr.rel (0) target = $region17
  $region16: #{batch_norm_sequence.2} parent=0 // pred_region
    _
  $region17: #{batch_norm_sequence.2} parent=0 // pred_fallthru
    _
  // Predicated region
  $region18: #{batch_norm_sequence.2} parent=0 // pred_check
    _
  $region19: #{batch_norm_sequence.2} parent=0 // pred_check_branch
    %45 = sbr.rel (0) target = $region21
  $region20: #{batch_norm_sequence.2} parent=0 // pred_region
    _
  $region21: #{batch_norm_sequence.2} parent=0 // pred_fallthru
    _
  // Predicated region
  $region22: #{batch_norm_sequence.2} parent=0 // pred_check
    _
  $region23: #{batch_norm_sequence.2} parent=0 // pred_check_branch
    %47 = sbr.rel (0) target = $region25
  $region24: #{batch_norm_sequence.2} parent=0 // pred_region
    _
  $region25: #{batch_norm_sequence.2} parent=0 // pred_fallthru
    _

// kernel: batch_norm_sequence.3
$region0: #{batch_norm_sequence.3}
  #allocation0 [shape = 'u32[]', space=smem, size = 0x4, offset = 0x4, fixed_abs, tag = 'smem constant byte address 0x4 - core index']
  #allocation1 [shape = 'u32[144,128]{1,0:T(1,128)}', space=vmem, size = 0x12000, scoped, tag = 'internal scratch']
  %s0 = inlined_call_operand.vmem [shape: f32[16,128], index: 0, kind: input, shape index: {}]
  %s1 = inlined_call_operand.vmem [shape: f32[1,128], index: 1, kind: input, shape index: {}]
  %s2 = inlined_call_operand.vmem [shape: f32[1,128], index: 2, kind: input, shape index: {}]
  %s3 = inlined_call_operand.vmem [shape: f32[16,128], index: 3, kind: output, shape index: {}]
  %s4 = sld [smem:[#allocation0]]
  $region22: #{batch_norm_sequence.3} parent=0
    _
  %s6 = ssub.s32 1, %s4
  %s7 = scalar_select 0, %s6, %s4
  // Predicated region
  $region2: #{batch_norm_sequence.3} parent=0 // pred_check
    _
  $region3: #{batch_norm_sequence.3} parent=0 // pred_check_branch
    %9 = sbr.rel (0) target = $region5
  $region4: #{batch_norm_sequence.3} parent=0 // pred_region
    _
  $region5: #{batch_norm_sequence.3} parent=0 // pred_fallthru
    _
  // Predicated region
  $region6: #{batch_norm_sequence.3} parent=0 // pred_check
    _
  $region7: #{batch_norm_sequence.3} parent=0 // pred_check_branch
    %11 = sbr.rel (0) target = $region9
  $region8: #{batch_norm_sequence.3} parent=0 // pred_region
    _
  $region9: #{batch_norm_sequence.3} parent=0 // pred_fallthru
    _
  // Predicated region
  $region10: #{batch_norm_sequence.3} parent=0 // pred_check
    _
  $region11: #{batch_norm_sequence.3} parent=0 // pred_check_branch
    %13 = sbr.rel (0) target = $region13
  $region12: #{batch_norm_sequence.3} parent=0 // pred_region
    _
  $region13: #{batch_norm_sequence.3} parent=0 // pred_fallthru
    _
  %v14 = vld [vmem:[%s0] sm:$0xff]
  %v15 = vld [vmem:[%s0 + $0x8] sm:$0xff]
  %v16 = vld [vmem:[%s1] sm:$0x1]
  %v18 = vlaneseq
  %v19 = vshrl.u32 %v18, 7
  %v20 = vsub.s32 0, %v19
  %v21 = vrot.slane %v16, %v20
  %v23 = vmul.f32 %v14, %v21
  %v24 = vmul.f32 %v15, %v21
  %v25 = vld [vmem:[%s2] sm:$0x1]
  %v27 = vlaneseq
  %v28 = vshrl.u32 %v27, 7
  %v29 = vsub.s32 0, %v28
  %v30 = vrot.slane %v25, %v29
  %v32 = vadd.f32 %v23, %v30
  %v33 = vadd.f32 %v24, %v30
  %34 = vst [vmem:[%s3] sm:$0xff] %v32
  %35 = vst [vmem:[%s3 + $0x8] sm:$0xff] %v33
  // Predicated region
  $region14: #{batch_norm_sequence.3} parent=0 // pred_check
    _
  $region15: #{batch_norm_sequence.3} parent=0 // pred_check_branch
    %37 = sbr.rel (0) target = $region17
  $region16: #{batch_norm_sequence.3} parent=0 // pred_region
    _
  $region17: #{batch_norm_sequence.3} parent=0 // pred_fallthru
    _
  // Predicated region
  $region18: #{batch_norm_sequence.3} parent=0 // pred_check
    _
  $region19: #{batch_norm_sequence.3} parent=0 // pred_check_branch
    %39 = sbr.rel (0) target = $region21
  $region20: #{batch_norm_sequence.3} parent=0 // pred_region
    _
  $region21: #{batch_norm_sequence.3} parent=0 // pred_fallthru
    _

</llo_original>
